<compile_context>
chip_gen: v7x
topology: tpu7x:2x2x1
jax: 0.10.0
libtpu: 0.0.40
codegen_flags: <defaults>
</compile_context>

<pallas_src>
import jax
import jax.numpy as jnp
from jax.experimental import pallas as pl
from jax.experimental.pallas import tpu as pltpu


def _gelu_tanh(x):
    # GELU with tanh approximation (matches nn.GELU(approximate='tanh')).
    # Kept in f32; the tanh lowers to the EUP (its own VLIW slot).
    c = jnp.float32(0.7978845608028654)  # sqrt(2/pi)
    return 0.5 * x * (1.0 + jnp.tanh(c * (x + 0.044715 * x * x * x)))


def sparse_occ_head_kernel(x_ref, w1_ref, b1_ref, w2_ref, b2_ref, o_ref):
    # x_ref:  (TM, C)  f32 tile of sparse voxel features (cast to bf16 here)
    # w1_ref: (C, H)   bf16 Linear1 weight ([in, out] layout)
    # b1_ref: (1, H)   f32 Linear1 bias
    # w2_ref: (H, O)   bf16 Linear2 weight (un-padded, O = out_channels)
    # b2_ref: (1, O)   f32 Linear2 bias
    # o_ref:  (TM, O)  output tile (un-padded; partial rows handled by Pallas)
    x = x_ref[...].astype(jnp.bfloat16)                      # VPU cast, hides under DMA
    h = jnp.dot(x, w1_ref[...], preferred_element_type=jnp.float32)
    h = _gelu_tanh(h + b1_ref[...])                          # f32 elementwise
    y = jnp.dot(h.astype(jnp.bfloat16), w2_ref[...],
                preferred_element_type=jnp.float32)
    o_ref[...] = (y + b2_ref[...]).astype(o_ref.dtype)


def _num_tensorcores():
    # v7x has 2 TensorCores per chip; v5e/v6e have 1.  Splitting tiny-N work
    # into 2 programs only pays when there are 2 TCs, otherwise it just adds
    # a ~0.35 us grid step.  Probe defensively; default to 1 (no split).
    try:
        info = pltpu.get_tpu_info()
        for name in ("num_tensorcores", "tensorcore_count", "num_cores",
                     "core_count"):
            v = getattr(info, name, None)
            if isinstance(v, int) and v > 0:
                return min(2, v)
    except Exception:
        pass
    try:
        v = getattr(jax.devices()[0], "num_cores", None)
        if isinstance(v, int) and v > 0:
            return min(2, v)
    except Exception:
        pass
    return 1


def _choose_tile_m(n, num_cores, max_tile=4096):
    # Big tiles amortize the ~0.35 us per-grid-step overhead; keep the block
    # count a multiple of the TC count so a 2-TC chip gets balanced work.
    pieces = max(1, min(2, num_cores))
    n_blocks = pieces * max(1, -(-n // (pieces * max_tile)))
    tile = -(-n // n_blocks)          # ceil
    tile = -(-tile // 8) * 8          # round up to the 8-row sublane quantum
    return max(8, min(max_tile, tile))


def sparse_occ_head(x, w1, b1, w2, b2, *, tile_m=None):
    """x: [N, C] sparse voxel features; w1: [C, H]; b1: [H]; w2: [H, O]; b2: [O]."""
    N, C = x.shape
    H = w1.shape[1]
    O = w2.shape[1]
    out_dtype = x.dtype

    if tile_m is None:
        tile_m = _choose_tile_m(N, _num_tensorcores())
    n_blocks = pl.cdiv(N, tile_m)

    # bf16 matmul operands (weights are tiny); biases stay f32, reshaped 2-D.
    w1_b = w1.astype(jnp.bfloat16)
    w2_b = w2.astype(jnp.bfloat16)
    b1_2d = b1.astype(jnp.float32).reshape(1, H)
    b2_2d = b2.astype(jnp.float32).reshape(1, O)

    out_itemsize = jnp.dtype(out_dtype).itemsize
    cost = pl.CostEstimate(
        flops=2 * N * (C * H + H * O),
        transcendentals=N * H,
        bytes_accessed=(N * C * jnp.dtype(x.dtype).itemsize   # x read
                        + C * H * 2 + H * 4                   # W1 + b1
                        + H * O * 2 + O * 4                   # W2 + b2
                        + N * O * out_itemsize),               # output write
    )

    return pl.pallas_call(
        sparse_occ_head_kernel,
        out_shape=jax.ShapeDtypeStruct((N, O), out_dtype),
        grid_spec=pltpu.PrefetchScalarGridSpec(
            num_scalar_prefetch=0,
            grid=(n_blocks,),
            in_specs=[
                pl.BlockSpec((tile_m, C), lambda i: (i, 0)),   # x tile (ragged OK)
                # Constant index maps: fetched once, resident across the grid.
                pl.BlockSpec((C, H), lambda i: (0, 0)),        # W1
                pl.BlockSpec((1, H), lambda i: (0, 0)),        # b1
                pl.BlockSpec((H, O), lambda i: (0, 0)),        # W2 (un-padded)
                pl.BlockSpec((1, O), lambda i: (0, 0)),        # b2 (un-padded)
            ],
            out_specs=pl.BlockSpec((tile_m, O), lambda i: (i, 0)),
        ),
        compiler_params=pltpu.CompilerParams(
            dimension_semantics=("parallel",),
            vmem_limit_bytes=48 * 1024 * 1024),
        cost_estimate=cost,
    )(x, w1_b, b1_2d, w2_b, b2_2d)


def reference(x, w1, b1, w2, b2):
    # Mirrors the kernel's numerics: bf16 matmul operands, f32 accumulation,
    # f32 bias + tanh-GELU, bf16 re-cast of the hidden activations.
    xf = x.astype(jnp.bfloat16).astype(jnp.float32)
    w1f = w1.astype(jnp.bfloat16).astype(jnp.float32)
    w2f = w2.astype(jnp.bfloat16).astype(jnp.float32)
    h = xf @ w1f + b1.astype(jnp.float32)
    h = _gelu_tanh(h)
    h = h.astype(jnp.bfloat16).astype(jnp.float32)
    y = h @ w2f + b2.astype(jnp.float32)
    return y.astype(x.dtype)


if __name__ == "__main__":
    # Configuration consistent with the module:
    #   channels=32, mlp_ratio=4 -> hidden=128, out_channels=8
    channels = 32
    mlp_ratio = 4.0
    hidden = int(channels * mlp_ratio)
    out_channels = 8

    key = jax.random.PRNGKey(0)
    kx, kw1, kb1, kw2, kb2 = jax.random.split(key, 5)

    # Deterministic parameter init (Linear weights stored as [in, out]).
    w1 = jax.random.normal(kw1, (channels, hidden), dtype=jnp.float32) * 0.02
    b1 = jax.random.normal(kb1, (hidden,), dtype=jnp.float32) * 0.01
    w2 = jax.random.normal(kw2, (hidden, out_channels), dtype=jnp.float32) * 0.02
    b2 = jax.random.normal(kb2, (out_channels,), dtype=jnp.float32) * 0.01

    ok = True
    # Case 1: small tile-friendly N.
    # Case 2: ragged N (partial input AND output block in a single grid step).
    # Case 3: multi-block grid with a ragged tail (exercises the parallel axis).
    for n_vox in (256, 250, 5000):
        x = jax.random.normal(jax.random.fold_in(kx, n_vox),
                              (n_vox, channels), dtype=jnp.float32)
        y = jax.block_until_ready(sparse_occ_head(x, w1, b1, w2, b2))
        y_ref = reference(x, w1, b1, w2, b2)
        ok &= (y.shape == (n_vox, out_channels))
        ok &= bool(jnp.allclose(y, y_ref, atol=2e-4, rtol=2e-3))

    assert ok
    print("KERNEL_OK")
</pallas_src>

<mosaic_0001>
module attributes {stable_mosaic.version = 11 : i64} {
  func.func @sparse_occ_head_kernel(%arg0: i32, %arg1: memref<256x32xf32, #tpu.memory_space<vmem>>, %arg2: memref<32x128xbf16, #tpu.memory_space<vmem>>, %arg3: memref<1x128xf32, #tpu.memory_space<vmem>>, %arg4: memref<128x8xbf16, #tpu.memory_space<vmem>>, %arg5: memref<1x8xf32, #tpu.memory_space<vmem>>, %arg6: memref<256x8xf32, #tpu.memory_space<vmem>>) attributes {dimension_semantics = [#tpu.dimension_semantics<parallel>], iteration_bounds = array<i64: 1>, scalar_prefetch = 0 : i64, scratch_operands = 0 : i64, tpu.core_type = #tpu.core_type<tc>, window_params = [{transform_indices = @transform_0, window_bounds = array<i64: 256, 32>}, {pipeline_mode = #tpu.pipeline_mode<synchronous>, transform_indices = @transform_1, window_bounds = array<i64: 32, 128>}, {pipeline_mode = #tpu.pipeline_mode<synchronous>, transform_indices = @transform_2, window_bounds = array<i64: 1, 128>}, {pipeline_mode = #tpu.pipeline_mode<synchronous>, transform_indices = @transform_3, window_bounds = array<i64: 128, 8>}, {pipeline_mode = #tpu.pipeline_mode<synchronous>, transform_indices = @transform_4, window_bounds = array<i64: 1, 8>}, {transform_indices = @transform_5, window_bounds = array<i64: 256, 8>}]} {
    %c0 = arith.constant 0 : index
    %c0_0 = arith.constant 0 : index
    %0 = vector.load %arg1[%c0, %c0_0] : memref<256x32xf32, #tpu.memory_space<vmem>>, vector<256x32xf32>
    %1 = arith.truncf %0 : vector<256x32xf32> to vector<256x32xbf16>
    %c0_1 = arith.constant 0 : index
    %c0_2 = arith.constant 0 : index
    %2 = vector.load %arg2[%c0_1, %c0_2] : memref<32x128xbf16, #tpu.memory_space<vmem>>, vector<32x128xbf16>
    %cst = arith.constant dense<0.000000e+00> : vector<256x128xf32>
    %3 = tpu.matmul %1, %2, %cst {dimension_numbers = #tpu.dot_dimension_numbers<[1], [0], [0], [1], [0, 0, 1, 1], [], []>} : vector<256x32xbf16>, vector<32x128xbf16>, vector<256x128xf32> -> vector<256x128xf32>
    %c0_3 = arith.constant 0 : index
    %c0_4 = arith.constant 0 : index
    %4 = vector.load %arg3[%c0_3, %c0_4] : memref<1x128xf32, #tpu.memory_space<vmem>>, vector<1x128xf32>
    %5 = vector.broadcast %4 : vector<1x128xf32> to vector<256x128xf32>
    %6 = arith.addf %3, %5 : vector<256x128xf32>
    %cst_5 = arith.constant 5.000000e-01 : f32
    %7 = vector.broadcast %cst_5 : f32 to vector<256x128xf32>
    %8 = arith.mulf %7, %6 : vector<256x128xf32>
    %cst_6 = arith.constant 4.471500e-02 : f32
    %9 = vector.broadcast %cst_6 : f32 to vector<256x128xf32>
    %10 = arith.mulf %9, %6 : vector<256x128xf32>
    %11 = arith.mulf %10, %6 : vector<256x128xf32>
    %12 = arith.mulf %11, %6 : vector<256x128xf32>
    %13 = arith.addf %6, %12 : vector<256x128xf32>
    %cst_7 = arith.constant 0.797884583 : f32
    %14 = vector.broadcast %cst_7 : f32 to vector<256x128xf32>
    %15 = arith.mulf %14, %13 : vector<256x128xf32>
    %16 = math.tanh %15 : vector<256x128xf32>
    %cst_8 = arith.constant 1.000000e+00 : f32
    %17 = vector.broadcast %cst_8 : f32 to vector<256x128xf32>
    %18 = arith.addf %17, %16 : vector<256x128xf32>
    %19 = arith.mulf %8, %18 : vector<256x128xf32>
    %20 = arith.truncf %19 : vector<256x128xf32> to vector<256x128xbf16>
    %c0_9 = arith.constant 0 : index
    %c0_10 = arith.constant 0 : index
    %21 = vector.load %arg4[%c0_9, %c0_10] : memref<128x8xbf16, #tpu.memory_space<vmem>>, vector<128x8xbf16>
    %cst_11 = arith.constant dense<0.000000e+00> : vector<256x8xf32>
    %22 = tpu.matmul %20, %21, %cst_11 {dimension_numbers = #tpu.dot_dimension_numbers<[1], [0], [0], [1], [0, 0, 1, 1], [], []>} : vector<256x128xbf16>, vector<128x8xbf16>, vector<256x8xf32> -> vector<256x8xf32>
    %c0_12 = arith.constant 0 : index
    %c0_13 = arith.constant 0 : index
    %23 = vector.load %arg5[%c0_12, %c0_13] : memref<1x8xf32, #tpu.memory_space<vmem>>, vector<1x8xf32>
    %24 = vector.broadcast %23 : vector<1x8xf32> to vector<256x8xf32>
    %25 = arith.addf %22, %24 : vector<256x8xf32>
    %c0_14 = arith.constant 0 : index
    %c0_15 = arith.constant 0 : index
    %26 = vector.load %arg6[%c0_14, %c0_15] : memref<256x8xf32, #tpu.memory_space<vmem>>, vector<256x8xf32>
    tpu.vector_store %arg6[%c0_14, %c0_15], %25 {strides = array<i32>} : memref<256x8xf32, #tpu.memory_space<vmem>>, vector<256x8xf32>,
    return
  }
  func.func @transform_0(%arg0: i32) -> (i32, i32) {
    %c0_i32 = arith.constant 0 : i32
    %c0_i32_0 = arith.constant 0 : i32
    return %arg0, %c0_i32 : i32, i32
  }
  func.func @transform_1(%arg0: i32) -> (i32, i32) {
    %c0_i32 = arith.constant 0 : i32
    %c0_i32_0 = arith.constant 0 : i32
    %c0_i32_1 = arith.constant 0 : i32
    return %c0_i32, %c0_i32_0 : i32, i32
  }
  func.func @transform_2(%arg0: i32) -> (i32, i32) {
    %c0_i32 = arith.constant 0 : i32
    %c0_i32_0 = arith.constant 0 : i32
    %c0_i32_1 = arith.constant 0 : i32
    return %c0_i32, %c0_i32_0 : i32, i32
  }
  func.func @transform_3(%arg0: i32) -> (i32, i32) {
    %c0_i32 = arith.constant 0 : i32
    %c0_i32_0 = arith.constant 0 : i32
    %c0_i32_1 = arith.constant 0 : i32
    return %c0_i32, %c0_i32_0 : i32, i32
  }
  func.func @transform_4(%arg0: i32) -> (i32, i32) {
    %c0_i32 = arith.constant 0 : i32
    %c0_i32_0 = arith.constant 0 : i32
    %c0_i32_1 = arith.constant 0 : i32
    return %c0_i32, %c0_i32_0 : i32, i32
  }
  func.func @transform_5(%arg0: i32) -> (i32, i32) {
    %c0_i32 = arith.constant 0 : i32
    %c0_i32_0 = arith.constant 0 : i32
    return %arg0, %c0_i32 : i32, i32
  }
}

</mosaic_0001>

<llo_original>
// kernel: tpu_custom_call.1
$region0: #{tpu_custom_call.1}
  #allocation0 [shape = 'u32[]', space=smem, size = 0x4, offset = 0x4, fixed_abs, tag = 'smem constant byte address 0x4 - core index']
  #allocation1 [shape = 'u32[144,128]{1,0:T(1,128)}', space=vmem, size = 0x12000, scoped, tag = 'internal scratch']
  %s0 = inlined_call_operand.vmem [shape: f32[256,32], index: 0, kind: input, shape index: {}]
  %s1 = inlined_call_operand.vmem [shape: bf16[32,128], index: 1, kind: input, shape index: {}]
  %s2 = inlined_call_operand.vmem [shape: f32[1,128], index: 2, kind: input, shape index: {}]
  %s3 = inlined_call_operand.vmem [shape: bf16[128,8], index: 3, kind: input, shape index: {}]
  %s4 = inlined_call_operand.vmem [shape: f32[1,8], index: 4, kind: input, shape index: {}]
  %s5 = inlined_call_operand.vmem [shape: f32[256,8], index: 5, kind: output, shape index: {}]
  %s6 = sld [smem:[#allocation0]]
  $region30: #{tpu_custom_call.1} parent=0
    _
  %s8 = ssub.s32 1, %s6
  %s9 = scalar_select 0, %s8, %s6
  // Predicated region
  $region2: #{tpu_custom_call.1} parent=0 // pred_check
    _
  $region3: #{tpu_custom_call.1} parent=0 // pred_check_branch
    %11 = sbr.rel (0) target = $region5
  $region4: #{tpu_custom_call.1} parent=0 // pred_region
    _
  $region5: #{tpu_custom_call.1} parent=0 // pred_fallthru
    _
  // Predicated region
  $region6: #{tpu_custom_call.1} parent=0 // pred_check
    _
  $region7: #{tpu_custom_call.1} parent=0 // pred_check_branch
    %13 = sbr.rel (0) target = $region9
  $region8: #{tpu_custom_call.1} parent=0 // pred_region
    _
  $region9: #{tpu_custom_call.1} parent=0 // pred_fallthru
    _
  // Predicated region
  $region10: #{tpu_custom_call.1} parent=0 // pred_check
    _
  $region11: #{tpu_custom_call.1} parent=0 // pred_check_branch
    %15 = sbr.rel (0) target = $region13
  $region12: #{tpu_custom_call.1} parent=0 // pred_region
    _
  $region13: #{tpu_custom_call.1} parent=0 // pred_fallthru
    _
  // Predicated region
  $region14: #{tpu_custom_call.1} parent=0 // pred_check
    _
  $region15: #{tpu_custom_call.1} parent=0 // pred_check_branch
    %17 = sbr.rel (0) target = $region17
  $region16: #{tpu_custom_call.1} parent=0 // pred_region
    _
  $region17: #{tpu_custom_call.1} parent=0 // pred_fallthru
    _
  // Predicated region
  $region18: #{tpu_custom_call.1} parent=0 // pred_check
    _
  $region19: #{tpu_custom_call.1} parent=0 // pred_check_branch
    %19 = sbr.rel (0) target = $region21
  $region20: #{tpu_custom_call.1} parent=0 // pred_region
    _
  $region21: #{tpu_custom_call.1} parent=0 // pred_fallthru
    _
  %v21 = vld [vmem:[%s0] sm:$0xff]
  %v22 = vld [vmem:[%s0 + $0x8] sm:$0xff]
  %v23 = vld [vmem:[%s0 + $0x10] sm:$0xff]
  %v24 = vld [vmem:[%s0 + $0x18] sm:$0xff]
  %v25 = vld [vmem:[%s0 + $0x20] sm:$0xff]
  %v26 = vld [vmem:[%s0 + $0x28] sm:$0xff]
  %v27 = vld [vmem:[%s0 + $0x30] sm:$0xff]
  %v28 = vld [vmem:[%s0 + $0x38] sm:$0xff]
  %v29 = vld [vmem:[%s0 + $0x40] sm:$0xff]
  %v30 = vld [vmem:[%s0 + $0x48] sm:$0xff]
  %v31 = vld [vmem:[%s0 + $0x50] sm:$0xff]
  %v32 = vld [vmem:[%s0 + $0x58] sm:$0xff]
  %v33 = vld [vmem:[%s0 + $0x60] sm:$0xff]
  %v34 = vld [vmem:[%s0 + $0x68] sm:$0xff]
  %v35 = vld [vmem:[%s0 + $0x70] sm:$0xff]
  %v36 = vld [vmem:[%s0 + $0x78] sm:$0xff]
  %v37 = vld [vmem:[%s0 + $0x80] sm:$0xff]
  %v38 = vld [vmem:[%s0 + $0x88] sm:$0xff]
  %v39 = vld [vmem:[%s0 + $0x90] sm:$0xff]
  %v40 = vld [vmem:[%s0 + $0x98] sm:$0xff]
  %v41 = vld [vmem:[%s0 + $0xa0] sm:$0xff]
  %v42 = vld [vmem:[%s0 + $0xa8] sm:$0xff]
  %v43 = vld [vmem:[%s0 + $0xb0] sm:$0xff]
  %v44 = vld [vmem:[%s0 + $0xb8] sm:$0xff]
  %v45 = vld [vmem:[%s0 + $0xc0] sm:$0xff]
  %v46 = vld [vmem:[%s0 + $0xc8] sm:$0xff]
  %v47 = vld [vmem:[%s0 + $0xd0] sm:$0xff]
  %v48 = vld [vmem:[%s0 + $0xd8] sm:$0xff]
  %v49 = vld [vmem:[%s0 + $0xe0] sm:$0xff]
  %v50 = vld [vmem:[%s0 + $0xe8] sm:$0xff]
  %v51 = vld [vmem:[%s0 + $0xf0] sm:$0xff]
  %v52 = vld [vmem:[%s0 + $0xf8] sm:$0xff]
  %v53 = vpack.c.bf16 %v22, %v21
  %v54 = vpack.c.bf16 %v24, %v23
  %v55 = vpack.c.bf16 %v26, %v25
  %v56 = vpack.c.bf16 %v28, %v27
  %v57 = vpack.c.bf16 %v30, %v29
  %v58 = vpack.c.bf16 %v32, %v31
  %v59 = vpack.c.bf16 %v34, %v33
  %v60 = vpack.c.bf16 %v36, %v35
  %v61 = vpack.c.bf16 %v38, %v37
  %v62 = vpack.c.bf16 %v40, %v39
  %v63 = vpack.c.bf16 %v42, %v41
  %v64 = vpack.c.bf16 %v44, %v43
  %v65 = vpack.c.bf16 %v46, %v45
  %v66 = vpack.c.bf16 %v48, %v47
  %v67 = vpack.c.bf16 %v50, %v49
  %v68 = vpack.c.bf16 %v52, %v51
  %v69 = vld [vmem:[%s1] sm:$0xf]
  %v70 = vld [vmem:[%s1 + $0x4] sm:$0xf]
  %v71 = vld [vmem:[%s1 + $0x8] sm:$0xf]
  %v72 = vld [vmem:[%s1 + $0xc] sm:$0xf]
  %v73 = vld [vmem:[%s2] sm:$0x1]
  %v75 = vlaneseq
  %v76 = vshrl.u32 %v75, 7
  %v77 = vsub.s32 0, %v76
  %v78 = vrot.slane %v73, %v77
  %v84 = vunpack.c.l.b16 %v69
  %v85 = vunpack.c.l.b16 %v70
  %v86 = vunpack.c.l.b16 %v71
  %v87 = vunpack.c.l.b16 %v72
  %v88 = vpack.c.b16 %v85, %v84
  %v89 = vpack.c.b16 %v87, %v86
  %vm92 = vcmask 261120
  %v94 = vsel %vm92, %v53, 0
  %v97 = vsel %vm92, %v54, 0
  %v100 = vsel %vm92, %v55, 0
  %v103 = vsel %vm92, %v56, 0
  %v106 = vsel %vm92, %v57, 0
  %v109 = vsel %vm92, %v58, 0
  %v112 = vsel %vm92, %v59, 0
  %v115 = vsel %vm92, %v60, 0
  %v118 = vsel %vm92, %v61, 0
  %v121 = vsel %vm92, %v62, 0
  %v124 = vsel %vm92, %v63, 0
  %v127 = vsel %vm92, %v64, 0
  %v130 = vsel %vm92, %v65, 0
  %v133 = vsel %vm92, %v66, 0
  %v136 = vsel %vm92, %v67, 0
  %v139 = vsel %vm92, %v68, 0
  %141 = vmatprep.subr.bf16.mxu0 0
  %142 = vmatpush1.bf16.msra.mxu0 %v88
  %143 = vmatprep.subr.bf16.mxu0 0
  %144 = vmatpush1.bf16.msra.mxu0 %v89
  %145 = vmatprep.subr.bf16.mxu0 0
  %146 = vmatpush1.bf16.msra.mxu0 0
  %147 = vmatprep.subr.bf16.mxu0 0
  %148 = vmatpush1.bf16.msra.mxu0 0
  %149 = vmatprep.subr.bf16.mxu0 0
  %150 = vmatpush1.bf16.msra.mxu0 0
  %151 = vmatprep.subr.bf16.mxu0 0
  %152 = vmatpush1.bf16.msra.mxu0 0
  %153 = vmatprep.subr.bf16.mxu0 0
  %154 = vmatpush1.bf16.msra.mxu0 0
  %155 = vmatprep.subr.bf16.mxu0 0
  %156 = vmatpush1.bf16.msra.mxu0 0
  %157 = vmatprep.subr.bf16.mxu0 0
  %158 = vmatpush1.bf16.msra.mxu0 0
  %159 = vmatprep.subr.bf16.mxu0 0
  %160 = vmatpush1.bf16.msra.mxu0 0
  %161 = vmatprep.subr.bf16.mxu0 0
  %162 = vmatpush1.bf16.msra.mxu0 0
  %163 = vmatprep.subr.bf16.mxu0 0
  %164 = vmatpush1.bf16.msra.mxu0 0
  %165 = vmatprep.subr.bf16.mxu0 0
  %166 = vmatpush1.bf16.msra.mxu0 0
  %167 = vmatprep.subr.bf16.mxu0 0
  %168 = vmatpush1.bf16.msra.mxu0 0
  %169 = vmatprep.subr.bf16.mxu0 0
  %170 = vmatpush1.bf16.msra.mxu0 0
  %171 = vmatprep.subr.bf16.mxu0 0
  %172 = vmatpush1.bf16.msra.mxu0 0
  %173 = vmatprep.mubr.bf16.mxu0 0
  %174 = vmatmul.mubr.bf16.gmra.mrb[0].mxu0 %v94
  %v175 = vpop.f32.mrb[0].mxu0
  %v176 = vadd.f32 %v78, %v175
  %v177 = vpop.f32.mrb[0].mxu0
  %v178 = vpop.f32.mrb[0].mxu0
  %v179 = vadd.f32 %v78, %v178
  %v180 = vpop.f32.mrb[0].mxu0
  %181 = vmatprep.mubr.bf16.mxu0 0
  %182 = vmatmul.mubr.bf16.gmra.mrb[0].mxu0 %v97
  %v183 = vpop.f32.mrb[0].mxu0
  %v184 = vadd.f32 %v78, %v183
  %v185 = vpop.f32.mrb[0].mxu0
  %v186 = vpop.f32.mrb[0].mxu0
  %v187 = vadd.f32 %v78, %v186
  %v188 = vpop.f32.mrb[0].mxu0
  %189 = vmatprep.mubr.bf16.mxu0 0
  %190 = vmatmul.mubr.bf16.gmra.mrb[0].mxu0 %v100
  %v191 = vpop.f32.mrb[0].mxu0
  %v192 = vadd.f32 %v78, %v191
  %v193 = vpop.f32.mrb[0].mxu0
  %v194 = vpop.f32.mrb[0].mxu0
  %v195 = vadd.f32 %v78, %v194
  %v196 = vpop.f32.mrb[0].mxu0
  %197 = vmatprep.mubr.bf16.mxu0 0
  %198 = vmatmul.mubr.bf16.gmra.mrb[0].mxu0 %v103
  %v199 = vpop.f32.mrb[0].mxu0
  %v200 = vadd.f32 %v78, %v199
  %v201 = vpop.f32.mrb[0].mxu0
  %v202 = vpop.f32.mrb[0].mxu0
  %v203 = vadd.f32 %v78, %v202
  %v204 = vpop.f32.mrb[0].mxu0
  %205 = vmatprep.mubr.bf16.mxu0 0
  %206 = vmatmul.mubr.bf16.gmra.mrb[0].mxu0 %v106
  %v207 = vpop.f32.mrb[0].mxu0
  %v208 = vadd.f32 %v78, %v207
  %v209 = vpop.f32.mrb[0].mxu0
  %v210 = vpop.f32.mrb[0].mxu0
  %v211 = vadd.f32 %v78, %v210
  %v212 = vpop.f32.mrb[0].mxu0
  %213 = vmatprep.mubr.bf16.mxu0 0
  %214 = vmatmul.mubr.bf16.gmra.mrb[0].mxu0 %v109
  %v215 = vpop.f32.mrb[0].mxu0
  %v216 = vadd.f32 %v78, %v215
  %v217 = vpop.f32.mrb[0].mxu0
  %v218 = vpop.f32.mrb[0].mxu0
  %v219 = vadd.f32 %v78, %v218
  %v220 = vpop.f32.mrb[0].mxu0
  %221 = vmatprep.mubr.bf16.mxu0 0
  %222 = vmatmul.mubr.bf16.gmra.mrb[0].mxu0 %v112
  %v223 = vpop.f32.mrb[0].mxu0
  %v224 = vadd.f32 %v78, %v223
  %v225 = vpop.f32.mrb[0].mxu0
  %v226 = vpop.f32.mrb[0].mxu0
  %v227 = vadd.f32 %v78, %v226
  %v228 = vpop.f32.mrb[0].mxu0
  %229 = vmatprep.mubr.bf16.mxu0 0
  %230 = vmatmul.mubr.bf16.gmra.mrb[0].mxu0 %v115
  %v231 = vpop.f32.mrb[0].mxu0
  %v232 = vadd.f32 %v78, %v231
  %v233 = vpop.f32.mrb[0].mxu0
  %v234 = vpop.f32.mrb[0].mxu0
  %v235 = vadd.f32 %v78, %v234
  %v236 = vpop.f32.mrb[0].mxu0
  %237 = vmatprep.mubr.bf16.mxu0 0
  %238 = vmatmul.mubr.bf16.gmra.mrb[0].mxu0 %v118
  %v239 = vpop.f32.mrb[0].mxu0
  %v240 = vadd.f32 %v78, %v239
  %v241 = vpop.f32.mrb[0].mxu0
  %v242 = vpop.f32.mrb[0].mxu0
  %v243 = vadd.f32 %v78, %v242
  %v244 = vpop.f32.mrb[0].mxu0
  %245 = vmatprep.mubr.bf16.mxu0 0
  %246 = vmatmul.mubr.bf16.gmra.mrb[0].mxu0 %v121
  %v247 = vpop.f32.mrb[0].mxu0
  %v248 = vadd.f32 %v78, %v247
  %v249 = vpop.f32.mrb[0].mxu0
  %v250 = vpop.f32.mrb[0].mxu0
  %v251 = vadd.f32 %v78, %v250
  %v252 = vpop.f32.mrb[0].mxu0
  %253 = vmatprep.mubr.bf16.mxu0 0
  %254 = vmatmul.mubr.bf16.gmra.mrb[0].mxu0 %v124
  %v255 = vpop.f32.mrb[0].mxu0
  %v256 = vadd.f32 %v78, %v255
  %v257 = vpop.f32.mrb[0].mxu0
  %v258 = vpop.f32.mrb[0].mxu0
  %v259 = vadd.f32 %v78, %v258
  %v260 = vpop.f32.mrb[0].mxu0
  %261 = vmatprep.mubr.bf16.mxu0 0
  %262 = vmatmul.mubr.bf16.gmra.mrb[0].mxu0 %v127
  %v263 = vpop.f32.mrb[0].mxu0
  %v264 = vadd.f32 %v78, %v263
  %v265 = vpop.f32.mrb[0].mxu0
  %v266 = vpop.f32.mrb[0].mxu0
  %v267 = vadd.f32 %v78, %v266
  %v268 = vpop.f32.mrb[0].mxu0
  %269 = vmatprep.mubr.bf16.mxu0 0
  %270 = vmatmul.mubr.bf16.gmra.mrb[0].mxu0 %v130
  %v271 = vpop.f32.mrb[0].mxu0
  %v272 = vadd.f32 %v78, %v271
  %v273 = vpop.f32.mrb[0].mxu0
  %v274 = vpop.f32.mrb[0].mxu0
  %v275 = vadd.f32 %v78, %v274
  %v276 = vpop.f32.mrb[0].mxu0
  %277 = vmatprep.mubr.bf16.mxu0 0
  %278 = vmatmul.mubr.bf16.gmra.mrb[0].mxu0 %v133
  %v279 = vpop.f32.mrb[0].mxu0
  %v280 = vadd.f32 %v78, %v279
  %v281 = vpop.f32.mrb[0].mxu0
  %v282 = vpop.f32.mrb[0].mxu0
  %v283 = vadd.f32 %v78, %v282
  %v284 = vpop.f32.mrb[0].mxu0
  %285 = vmatprep.mubr.bf16.mxu0 0
  %286 = vmatmul.mubr.bf16.gmra.mrb[0].mxu0 %v136
  %v287 = vpop.f32.mrb[0].mxu0
  %v288 = vadd.f32 %v78, %v287
  %v289 = vpop.f32.mrb[0].mxu0
  %v290 = vpop.f32.mrb[0].mxu0
  %v291 = vadd.f32 %v78, %v290
  %v292 = vpop.f32.mrb[0].mxu0
  %293 = vmatprep.mubr.bf16.mxu0 0
  %294 = vmatmul.mubr.bf16.gmra.mrb[0].mxu0 %v139
  %v295 = vpop.f32.mrb[0].mxu0
  %v296 = vadd.f32 %v78, %v295
  %v297 = vpop.f32.mrb[0].mxu0
  %v298 = vpop.f32.mrb[0].mxu0
  %v299 = vadd.f32 %v78, %v298
  %v300 = vpop.f32.mrb[0].mxu0
  %301 = vdwg.mxu0
  %v302 = vmul.f32 %v176, 0.5
  %v303 = vmul.f32 %v179, 0.5
  %v304 = vmul.f32 %v184, 0.5
  %v305 = vmul.f32 %v187, 0.5
  %v306 = vmul.f32 %v192, 0.5
  %v307 = vmul.f32 %v195, 0.5
  %v308 = vmul.f32 %v200, 0.5
  %v309 = vmul.f32 %v203, 0.5
  %v310 = vmul.f32 %v208, 0.5
  %v311 = vmul.f32 %v211, 0.5
  %v312 = vmul.f32 %v216, 0.5
  %v313 = vmul.f32 %v219, 0.5
  %v314 = vmul.f32 %v224, 0.5
  %v315 = vmul.f32 %v227, 0.5
  %v316 = vmul.f32 %v232, 0.5
  %v317 = vmul.f32 %v235, 0.5
  %v318 = vmul.f32 %v240, 0.5
  %v319 = vmul.f32 %v243, 0.5
  %v320 = vmul.f32 %v248, 0.5
  %v321 = vmul.f32 %v251, 0.5
  %v322 = vmul.f32 %v256, 0.5
  %v323 = vmul.f32 %v259, 0.5
  %v324 = vmul.f32 %v264, 0.5
  %v325 = vmul.f32 %v267, 0.5
  %v326 = vmul.f32 %v272, 0.5
  %v327 = vmul.f32 %v275, 0.5
  %v328 = vmul.f32 %v280, 0.5
  %v329 = vmul.f32 %v283, 0.5
  %v330 = vmul.f32 %v288, 0.5
  %v331 = vmul.f32 %v291, 0.5
  %v332 = vmul.f32 %v296, 0.5
  %v333 = vmul.f32 %v299, 0.5
  %v334 = vmul.f32 %v176, 0.044715
  %v335 = vmul.f32 %v179, 0.044715
  %v336 = vmul.f32 %v184, 0.044715
  %v337 = vmul.f32 %v187, 0.044715
  %v338 = vmul.f32 %v192, 0.044715
  %v339 = vmul.f32 %v195, 0.044715
  %v340 = vmul.f32 %v200, 0.044715
  %v341 = vmul.f32 %v203, 0.044715
  %v342 = vmul.f32 %v208, 0.044715
  %v343 = vmul.f32 %v211, 0.044715
  %v344 = vmul.f32 %v216, 0.044715
  %v345 = vmul.f32 %v219, 0.044715
  %v346 = vmul.f32 %v224, 0.044715
  %v347 = vmul.f32 %v227, 0.044715
  %v348 = vmul.f32 %v232, 0.044715
  %v349 = vmul.f32 %v235, 0.044715
  %v350 = vmul.f32 %v240, 0.044715
  %v351 = vmul.f32 %v243, 0.044715
  %v352 = vmul.f32 %v248, 0.044715
  %v353 = vmul.f32 %v251, 0.044715
  %v354 = vmul.f32 %v256, 0.044715
  %v355 = vmul.f32 %v259, 0.044715
  %v356 = vmul.f32 %v264, 0.044715
  %v357 = vmul.f32 %v267, 0.044715
  %v358 = vmul.f32 %v272, 0.044715
  %v359 = vmul.f32 %v275, 0.044715
  %v360 = vmul.f32 %v280, 0.044715
  %v361 = vmul.f32 %v283, 0.044715
  %v362 = vmul.f32 %v288, 0.044715
  %v363 = vmul.f32 %v291, 0.044715
  %v364 = vmul.f32 %v296, 0.044715
  %v365 = vmul.f32 %v299, 0.044715
  %v366 = vmul.f32 %v334, %v176
  %v367 = vmul.f32 %v335, %v179
  %v368 = vmul.f32 %v336, %v184
  %v369 = vmul.f32 %v337, %v187
  %v370 = vmul.f32 %v338, %v192
  %v371 = vmul.f32 %v339, %v195
  %v372 = vmul.f32 %v340, %v200
  %v373 = vmul.f32 %v341, %v203
  %v374 = vmul.f32 %v342, %v208
  %v375 = vmul.f32 %v343, %v211
  %v376 = vmul.f32 %v344, %v216
  %v377 = vmul.f32 %v345, %v219
  %v378 = vmul.f32 %v346, %v224
  %v379 = vmul.f32 %v347, %v227
  %v380 = vmul.f32 %v348, %v232
  %v381 = vmul.f32 %v349, %v235
  %v382 = vmul.f32 %v350, %v240
  %v383 = vmul.f32 %v351, %v243
  %v384 = vmul.f32 %v352, %v248
  %v385 = vmul.f32 %v353, %v251
  %v386 = vmul.f32 %v354, %v256
  %v387 = vmul.f32 %v355, %v259
  %v388 = vmul.f32 %v356, %v264
  %v389 = vmul.f32 %v357, %v267
  %v390 = vmul.f32 %v358, %v272
  %v391 = vmul.f32 %v359, %v275
  %v392 = vmul.f32 %v360, %v280
  %v393 = vmul.f32 %v361, %v283
  %v394 = vmul.f32 %v362, %v288
  %v395 = vmul.f32 %v363, %v291
  %v396 = vmul.f32 %v364, %v296
  %v397 = vmul.f32 %v365, %v299
  %v398 = vmul.f32 %v366, %v176
  %v399 = vmul.f32 %v367, %v179
  %v400 = vmul.f32 %v368, %v184
  %v401 = vmul.f32 %v369, %v187
  %v402 = vmul.f32 %v370, %v192
  %v403 = vmul.f32 %v371, %v195
  %v404 = vmul.f32 %v372, %v200
  %v405 = vmul.f32 %v373, %v203
  %v406 = vmul.f32 %v374, %v208
  %v407 = vmul.f32 %v375, %v211
  %v408 = vmul.f32 %v376, %v216
  %v409 = vmul.f32 %v377, %v219
  %v410 = vmul.f32 %v378, %v224
  %v411 = vmul.f32 %v379, %v227
  %v412 = vmul.f32 %v380, %v232
  %v413 = vmul.f32 %v381, %v235
  %v414 = vmul.f32 %v382, %v240
  %v415 = vmul.f32 %v383, %v243
  %v416 = vmul.f32 %v384, %v248
  %v417 = vmul.f32 %v385, %v251
  %v418 = vmul.f32 %v386, %v256
  %v419 = vmul.f32 %v387, %v259
  %v420 = vmul.f32 %v388, %v264
  %v421 = vmul.f32 %v389, %v267
  %v422 = vmul.f32 %v390, %v272
  %v423 = vmul.f32 %v391, %v275
  %v424 = vmul.f32 %v392, %v280
  %v425 = vmul.f32 %v393, %v283
  %v426 = vmul.f32 %v394, %v288
  %v427 = vmul.f32 %v395, %v291
  %v428 = vmul.f32 %v396, %v296
  %v429 = vmul.f32 %v397, %v299
  %v430 = vadd.f32 %v176, %v398
  %v431 = vadd.f32 %v179, %v399
  %v432 = vadd.f32 %v184, %v400
  %v433 = vadd.f32 %v187, %v401
  %v434 = vadd.f32 %v192, %v402
  %v435 = vadd.f32 %v195, %v403
  %v436 = vadd.f32 %v200, %v404
  %v437 = vadd.f32 %v203, %v405
  %v438 = vadd.f32 %v208, %v406
  %v439 = vadd.f32 %v211, %v407
  %v440 = vadd.f32 %v216, %v408
  %v441 = vadd.f32 %v219, %v409
  %v442 = vadd.f32 %v224, %v410
  %v443 = vadd.f32 %v227, %v411
  %v444 = vadd.f32 %v232, %v412
  %v445 = vadd.f32 %v235, %v413
  %v446 = vadd.f32 %v240, %v414
  %v447 = vadd.f32 %v243, %v415
  %v448 = vadd.f32 %v248, %v416
  %v449 = vadd.f32 %v251, %v417
  %v450 = vadd.f32 %v256, %v418
  %v451 = vadd.f32 %v259, %v419
  %v452 = vadd.f32 %v264, %v420
  %v453 = vadd.f32 %v267, %v421
  %v454 = vadd.f32 %v272, %v422
  %v455 = vadd.f32 %v275, %v423
  %v456 = vadd.f32 %v280, %v424
  %v457 = vadd.f32 %v283, %v425
  %v458 = vadd.f32 %v288, %v426
  %v459 = vadd.f32 %v291, %v427
  %v460 = vadd.f32 %v296, %v428
  %v461 = vadd.f32 %v299, %v429
  %v462 = vmul.f32 %v430, 0.7978846
  %v463 = vmul.f32 %v431, 0.7978846
  %v464 = vmul.f32 %v432, 0.7978846
  %v465 = vmul.f32 %v433, 0.7978846
  %v466 = vmul.f32 %v434, 0.7978846
  %v467 = vmul.f32 %v435, 0.7978846
  %v468 = vmul.f32 %v436, 0.7978846
  %v469 = vmul.f32 %v437, 0.7978846
  %v470 = vmul.f32 %v438, 0.7978846
  %v471 = vmul.f32 %v439, 0.7978846
  %v472 = vmul.f32 %v440, 0.7978846
  %v473 = vmul.f32 %v441, 0.7978846
  %v474 = vmul.f32 %v442, 0.7978846
  %v475 = vmul.f32 %v443, 0.7978846
  %v476 = vmul.f32 %v444, 0.7978846
  %v477 = vmul.f32 %v445, 0.7978846
  %v478 = vmul.f32 %v446, 0.7978846
  %v479 = vmul.f32 %v447, 0.7978846
  %v480 = vmul.f32 %v448, 0.7978846
  %v481 = vmul.f32 %v449, 0.7978846
  %v482 = vmul.f32 %v450, 0.7978846
  %v483 = vmul.f32 %v451, 0.7978846
  %v484 = vmul.f32 %v452, 0.7978846
  %v485 = vmul.f32 %v453, 0.7978846
  %v486 = vmul.f32 %v454, 0.7978846
  %v487 = vmul.f32 %v455, 0.7978846
  %v488 = vmul.f32 %v456, 0.7978846
  %v489 = vmul.f32 %v457, 0.7978846
  %v490 = vmul.f32 %v458, 0.7978846
  %v491 = vmul.f32 %v459, 0.7978846
  %v492 = vmul.f32 %v460, 0.7978846
  %v493 = vmul.f32 %v461, 0.7978846
  %v494 = vtanh.pop %v462
  %v495 = vtanh.pop %v463
  %v496 = vtanh.pop %v464
  %v497 = vtanh.pop %v465
  %v498 = vtanh.pop %v466
  %v499 = vtanh.pop %v467
  %v500 = vtanh.pop %v468
  %v501 = vtanh.pop %v469
  %v502 = vtanh.pop %v470
  %v503 = vtanh.pop %v471
  %v504 = vtanh.pop %v472
  %v505 = vtanh.pop %v473
  %v506 = vtanh.pop %v474
  %v507 = vtanh.pop %v475
  %v508 = vtanh.pop %v476
  %v509 = vtanh.pop %v477
  %v510 = vtanh.pop %v478
  %v511 = vtanh.pop %v479
  %v512 = vtanh.pop %v480
  %v513 = vtanh.pop %v481
  %v514 = vtanh.pop %v482
  %v515 = vtanh.pop %v483
  %v516 = vtanh.pop %v484
  %v517 = vtanh.pop %v485
  %v518 = vtanh.pop %v486
  %v519 = vtanh.pop %v487
  %v520 = vtanh.pop %v488
  %v521 = vtanh.pop %v489
  %v522 = vtanh.pop %v490
  %v523 = vtanh.pop %v491
  %v524 = vtanh.pop %v492
  %v525 = vtanh.pop %v493
  %v526 = vadd.f32 %v494, 1.0
  %v527 = vadd.f32 %v495, 1.0
  %v528 = vadd.f32 %v496, 1.0
  %v529 = vadd.f32 %v497, 1.0
  %v530 = vadd.f32 %v498, 1.0
  %v531 = vadd.f32 %v499, 1.0
  %v532 = vadd.f32 %v500, 1.0
  %v533 = vadd.f32 %v501, 1.0
  %v534 = vadd.f32 %v502, 1.0
  %v535 = vadd.f32 %v503, 1.0
  %v536 = vadd.f32 %v504, 1.0
  %v537 = vadd.f32 %v505, 1.0
  %v538 = vadd.f32 %v506, 1.0
  %v539 = vadd.f32 %v507, 1.0
  %v540 = vadd.f32 %v508, 1.0
  %v541 = vadd.f32 %v509, 1.0
  %v542 = vadd.f32 %v510, 1.0
  %v543 = vadd.f32 %v511, 1.0
  %v544 = vadd.f32 %v512, 1.0
  %v545 = vadd.f32 %v513, 1.0
  %v546 = vadd.f32 %v514, 1.0
  %v547 = vadd.f32 %v515, 1.0
  %v548 = vadd.f32 %v516, 1.0
  %v549 = vadd.f32 %v517, 1.0
  %v550 = vadd.f32 %v518, 1.0
  %v551 = vadd.f32 %v519, 1.0
  %v552 = vadd.f32 %v520, 1.0
  %v553 = vadd.f32 %v521, 1.0
  %v554 = vadd.f32 %v522, 1.0
  %v555 = vadd.f32 %v523, 1.0
  %v556 = vadd.f32 %v524, 1.0
  %v557 = vadd.f32 %v525, 1.0
  %v558 = vmul.f32 %v302, %v526
  %v559 = vmul.f32 %v303, %v527
  %v560 = vmul.f32 %v304, %v528
  %v561 = vmul.f32 %v305, %v529
  %v562 = vmul.f32 %v306, %v530
  %v563 = vmul.f32 %v307, %v531
  %v564 = vmul.f32 %v308, %v532
  %v565 = vmul.f32 %v309, %v533
  %v566 = vmul.f32 %v310, %v534
  %v567 = vmul.f32 %v311, %v535
  %v568 = vmul.f32 %v312, %v536
  %v569 = vmul.f32 %v313, %v537
  %v570 = vmul.f32 %v314, %v538
  %v571 = vmul.f32 %v315, %v539
  %v572 = vmul.f32 %v316, %v540
  %v573 = vmul.f32 %v317, %v541
  %v574 = vmul.f32 %v318, %v542
  %v575 = vmul.f32 %v319, %v543
  %v576 = vmul.f32 %v320, %v544
  %v577 = vmul.f32 %v321, %v545
  %v578 = vmul.f32 %v322, %v546
  %v579 = vmul.f32 %v323, %v547
  %v580 = vmul.f32 %v324, %v548
  %v581 = vmul.f32 %v325, %v549
  %v582 = vmul.f32 %v326, %v550
  %v583 = vmul.f32 %v327, %v551
  %v584 = vmul.f32 %v328, %v552
  %v585 = vmul.f32 %v329, %v553
  %v586 = vmul.f32 %v330, %v554
  %v587 = vmul.f32 %v331, %v555
  %v588 = vmul.f32 %v332, %v556
  %v589 = vmul.f32 %v333, %v557
  %v590 = vpack.c.bf16 %v559, %v558
  %v591 = vpack.c.bf16 %v561, %v560
  %v592 = vpack.c.bf16 %v563, %v562
  %v593 = vpack.c.bf16 %v565, %v564
  %v594 = vpack.c.bf16 %v567, %v566
  %v595 = vpack.c.bf16 %v569, %v568
  %v596 = vpack.c.bf16 %v571, %v570
  %v597 = vpack.c.bf16 %v573, %v572
  %v598 = vpack.c.bf16 %v575, %v574
  %v599 = vpack.c.bf16 %v577, %v576
  %v600 = vpack.c.bf16 %v579, %v578
  %v601 = vpack.c.bf16 %v581, %v580
  %v602 = vpack.c.bf16 %v583, %v582
  %v603 = vpack.c.bf16 %v585, %v584
  %v604 = vpack.c.bf16 %v587, %v586
  %v605 = vpack.c.bf16 %v589, %v588
  %v606 = vld [vmem:[%s3] sm:$0xf]
  %v607 = vld [vmem:[%s3 + $0x4] sm:$0xf]
  %v608 = vld [vmem:[%s3 + $0x8] sm:$0xf]
  %v609 = vld [vmem:[%s3 + $0xc] sm:$0xf]
  %v610 = vld [vmem:[%s3 + $0x10] sm:$0xf]
  %v611 = vld [vmem:[%s3 + $0x14] sm:$0xf]
  %v612 = vld [vmem:[%s3 + $0x18] sm:$0xf]
  %v613 = vld [vmem:[%s3 + $0x1c] sm:$0xf]
  %v614 = vld [vmem:[%s3 + $0x20] sm:$0xf]
  %v615 = vld [vmem:[%s3 + $0x24] sm:$0xf]
  %v616 = vld [vmem:[%s3 + $0x28] sm:$0xf]
  %v617 = vld [vmem:[%s3 + $0x2c] sm:$0xf]
  %v618 = vld [vmem:[%s3 + $0x30] sm:$0xf]
  %v619 = vld [vmem:[%s3 + $0x34] sm:$0xf]
  %v620 = vld [vmem:[%s3 + $0x38] sm:$0xf]
  %v621 = vld [vmem:[%s3 + $0x3c] sm:$0xf]
  %v622 = vld [vmem:[%s4] sm:$0x1]
  %v624 = vlaneseq
  %v625 = vshrl.u32 %v624, 7
  %v626 = vsub.s32 0, %v625
  %v627 = vrot.slane %v622, %v626
  %v645 = vunpack.c.l.b16 %v606
  %v646 = vunpack.c.l.b16 %v607
  %v647 = vunpack.c.l.b16 %v608
  %v648 = vunpack.c.l.b16 %v609
  %v649 = vunpack.c.l.b16 %v610
  %v650 = vunpack.c.l.b16 %v611
  %v651 = vunpack.c.l.b16 %v612
  %v652 = vunpack.c.l.b16 %v613
  %v653 = vunpack.c.l.b16 %v614
  %v654 = vunpack.c.l.b16 %v615
  %v655 = vunpack.c.l.b16 %v616
  %v656 = vunpack.c.l.b16 %v617
  %v657 = vunpack.c.l.b16 %v618
  %v658 = vunpack.c.l.b16 %v619
  %v659 = vunpack.c.l.b16 %v620
  %v660 = vunpack.c.l.b16 %v621
  %v661 = vpack.c.b16 %v646, %v645
  %v662 = vpack.c.b16 %v648, %v647
  %v663 = vpack.c.b16 %v650, %v649
  %v664 = vpack.c.b16 %v652, %v651
  %v665 = vpack.c.b16 %v654, %v653
  %v666 = vpack.c.b16 %v656, %v655
  %v667 = vpack.c.b16 %v658, %v657
  %v668 = vpack.c.b16 %v660, %v659
  %677 = vmatprep.subr.bf16.mxu0 0
  %678 = vmatpush1.bf16.msra.mxu0 %v661
  %679 = vmatprep.subr.bf16.mxu0 0
  %680 = vmatpush1.bf16.msra.mxu0 %v662
  %681 = vmatprep.subr.bf16.mxu0 0
  %682 = vmatpush1.bf16.msra.mxu0 %v663
  %683 = vmatprep.subr.bf16.mxu0 0
  %684 = vmatpush1.bf16.msra.mxu0 %v664
  %685 = vmatprep.subr.bf16.mxu0 0
  %686 = vmatpush1.bf16.msra.mxu0 %v665
  %687 = vmatprep.subr.bf16.mxu0 0
  %688 = vmatpush1.bf16.msra.mxu0 %v666
  %689 = vmatprep.subr.bf16.mxu0 0
  %690 = vmatpush1.bf16.msra.mxu0 %v667
  %691 = vmatprep.subr.bf16.mxu0 0
  %692 = vmatpush1.bf16.msra.mxu0 %v668
  %693 = vmatprep.subr.bf16.mxu0 0
  %694 = vmatpush1.bf16.msra.mxu0 0
  %695 = vmatprep.subr.bf16.mxu0 0
  %696 = vmatpush1.bf16.msra.mxu0 0
  %697 = vmatprep.subr.bf16.mxu0 0
  %698 = vmatpush1.bf16.msra.mxu0 0
  %699 = vmatprep.subr.bf16.mxu0 0
  %700 = vmatpush1.bf16.msra.mxu0 0
  %701 = vmatprep.subr.bf16.mxu0 0
  %702 = vmatpush1.bf16.msra.mxu0 0
  %703 = vmatprep.subr.bf16.mxu0 0
  %704 = vmatpush1.bf16.msra.mxu0 0
  %705 = vmatprep.subr.bf16.mxu0 0
  %706 = vmatpush1.bf16.msra.mxu0 0
  %707 = vmatprep.subr.bf16.mxu0 0
  %708 = vmatpush1.bf16.msra.mxu0 0
  %709 = vmatprep.mubr.bf16.mxu0 0
  %710 = vmatmul.mubr.bf16.gmra.mrb[0].mxu0 %v590
  %v711 = vpop.f32.mrb[0].mxu0
  %v712 = vadd.f32 %v627, %v711
  %v713 = vpop.f32.mrb[0].mxu0
  %v714 = vpop.f32.mrb[0].mxu0
  %v715 = vadd.f32 %v627, %v714
  %v716 = vpop.f32.mrb[0].mxu0
  %717 = vmatprep.mubr.bf16.mxu0 0
  %718 = vmatmul.mubr.bf16.gmra.mrb[0].mxu0 %v591
  %v719 = vpop.f32.mrb[0].mxu0
  %v720 = vadd.f32 %v627, %v719
  %v721 = vpop.f32.mrb[0].mxu0
  %v722 = vpop.f32.mrb[0].mxu0
  %v723 = vadd.f32 %v627, %v722
  %v724 = vpop.f32.mrb[0].mxu0
  %725 = vmatprep.mubr.bf16.mxu0 0
  %726 = vmatmul.mubr.bf16.gmra.mrb[0].mxu0 %v592
  %v727 = vpop.f32.mrb[0].mxu0
  %v728 = vadd.f32 %v627, %v727
  %v729 = vpop.f32.mrb[0].mxu0
  %v730 = vpop.f32.mrb[0].mxu0
  %v731 = vadd.f32 %v627, %v730
  %v732 = vpop.f32.mrb[0].mxu0
  %733 = vmatprep.mubr.bf16.mxu0 0
  %734 = vmatmul.mubr.bf16.gmra.mrb[0].mxu0 %v593
  %v735 = vpop.f32.mrb[0].mxu0
  %v736 = vadd.f32 %v627, %v735
  %v737 = vpop.f32.mrb[0].mxu0
  %v738 = vpop.f32.mrb[0].mxu0
  %v739 = vadd.f32 %v627, %v738
  %v740 = vpop.f32.mrb[0].mxu0
  %741 = vmatprep.mubr.bf16.mxu0 0
  %742 = vmatmul.mubr.bf16.gmra.mrb[0].mxu0 %v594
  %v743 = vpop.f32.mrb[0].mxu0
  %v744 = vadd.f32 %v627, %v743
  %v745 = vpop.f32.mrb[0].mxu0
  %v746 = vpop.f32.mrb[0].mxu0
  %v747 = vadd.f32 %v627, %v746
  %v748 = vpop.f32.mrb[0].mxu0
  %749 = vmatprep.mubr.bf16.mxu0 0
  %750 = vmatmul.mubr.bf16.gmra.mrb[0].mxu0 %v595
  %v751 = vpop.f32.mrb[0].mxu0
  %v752 = vadd.f32 %v627, %v751
  %v753 = vpop.f32.mrb[0].mxu0
  %v754 = vpop.f32.mrb[0].mxu0
  %v755 = vadd.f32 %v627, %v754
  %v756 = vpop.f32.mrb[0].mxu0
  %757 = vmatprep.mubr.bf16.mxu0 0
  %758 = vmatmul.mubr.bf16.gmra.mrb[0].mxu0 %v596
  %v759 = vpop.f32.mrb[0].mxu0
  %v760 = vadd.f32 %v627, %v759
  %v761 = vpop.f32.mrb[0].mxu0
  %v762 = vpop.f32.mrb[0].mxu0
  %v763 = vadd.f32 %v627, %v762
  %v764 = vpop.f32.mrb[0].mxu0
  %765 = vmatprep.mubr.bf16.mxu0 0
  %766 = vmatmul.mubr.bf16.gmra.mrb[0].mxu0 %v597
  %v767 = vpop.f32.mrb[0].mxu0
  %v768 = vadd.f32 %v627, %v767
  %v769 = vpop.f32.mrb[0].mxu0
  %v770 = vpop.f32.mrb[0].mxu0
  %v771 = vadd.f32 %v627, %v770
  %v772 = vpop.f32.mrb[0].mxu0
  %773 = vmatprep.mubr.bf16.mxu0 0
  %774 = vmatmul.mubr.bf16.gmra.mrb[0].mxu0 %v598
  %v775 = vpop.f32.mrb[0].mxu0
  %v776 = vadd.f32 %v627, %v775
  %v777 = vpop.f32.mrb[0].mxu0
  %v778 = vpop.f32.mrb[0].mxu0
  %v779 = vadd.f32 %v627, %v778
  %v780 = vpop.f32.mrb[0].mxu0
  %781 = vmatprep.mubr.bf16.mxu0 0
  %782 = vmatmul.mubr.bf16.gmra.mrb[0].mxu0 %v599
  %v783 = vpop.f32.mrb[0].mxu0
  %v784 = vadd.f32 %v627, %v783
  %v785 = vpop.f32.mrb[0].mxu0
  %v786 = vpop.f32.mrb[0].mxu0
  %v787 = vadd.f32 %v627, %v786
  %v788 = vpop.f32.mrb[0].mxu0
  %789 = vmatprep.mubr.bf16.mxu0 0
  %790 = vmatmul.mubr.bf16.gmra.mrb[0].mxu0 %v600
  %v791 = vpop.f32.mrb[0].mxu0
  %v792 = vadd.f32 %v627, %v791
  %v793 = vpop.f32.mrb[0].mxu0
  %v794 = vpop.f32.mrb[0].mxu0
  %v795 = vadd.f32 %v627, %v794
  %v796 = vpop.f32.mrb[0].mxu0
  %797 = vmatprep.mubr.bf16.mxu0 0
  %798 = vmatmul.mubr.bf16.gmra.mrb[0].mxu0 %v601
  %v799 = vpop.f32.mrb[0].mxu0
  %v800 = vadd.f32 %v627, %v799
  %v801 = vpop.f32.mrb[0].mxu0
  %v802 = vpop.f32.mrb[0].mxu0
  %v803 = vadd.f32 %v627, %v802
  %v804 = vpop.f32.mrb[0].mxu0
  %805 = vmatprep.mubr.bf16.mxu0 0
  %806 = vmatmul.mubr.bf16.gmra.mrb[0].mxu0 %v602
  %v807 = vpop.f32.mrb[0].mxu0
  %v808 = vadd.f32 %v627, %v807
  %v809 = vpop.f32.mrb[0].mxu0
  %v810 = vpop.f32.mrb[0].mxu0
  %v811 = vadd.f32 %v627, %v810
  %v812 = vpop.f32.mrb[0].mxu0
  %813 = vmatprep.mubr.bf16.mxu0 0
  %814 = vmatmul.mubr.bf16.gmra.mrb[0].mxu0 %v603
  %v815 = vpop.f32.mrb[0].mxu0
  %v816 = vadd.f32 %v627, %v815
  %v817 = vpop.f32.mrb[0].mxu0
  %v818 = vpop.f32.mrb[0].mxu0
  %v819 = vadd.f32 %v627, %v818
  %v820 = vpop.f32.mrb[0].mxu0
  %821 = vmatprep.mubr.bf16.mxu0 0
  %822 = vmatmul.mubr.bf16.gmra.mrb[0].mxu0 %v604
  %v823 = vpop.f32.mrb[0].mxu0
  %v824 = vadd.f32 %v627, %v823
  %v825 = vpop.f32.mrb[0].mxu0
  %v826 = vpop.f32.mrb[0].mxu0
  %v827 = vadd.f32 %v627, %v826
  %v828 = vpop.f32.mrb[0].mxu0
  %829 = vmatprep.mubr.bf16.mxu0 0
  %830 = vmatmul.mubr.bf16.gmra.mrb[0].mxu0 %v605
  %v831 = vpop.f32.mrb[0].mxu0
  %v832 = vadd.f32 %v627, %v831
  %v833 = vpop.f32.mrb[0].mxu0
  %v834 = vpop.f32.mrb[0].mxu0
  %v835 = vadd.f32 %v627, %v834
  %v836 = vpop.f32.mrb[0].mxu0
  %837 = vdwg.mxu0
  %vm838 = vcmask 64512
  %839 = vst.msk [vmem:[%s5] sm:$0xff] %vm838, %v712
  %840 = vst.msk [vmem:[%s5 + $0x8] sm:$0xff] %vm838, %v715
  %841 = vst.msk [vmem:[%s5 + $0x10] sm:$0xff] %vm838, %v720
  %842 = vst.msk [vmem:[%s5 + $0x18] sm:$0xff] %vm838, %v723
  %843 = vst.msk [vmem:[%s5 + $0x20] sm:$0xff] %vm838, %v728
  %844 = vst.msk [vmem:[%s5 + $0x28] sm:$0xff] %vm838, %v731
  %845 = vst.msk [vmem:[%s5 + $0x30] sm:$0xff] %vm838, %v736
  %846 = vst.msk [vmem:[%s5 + $0x38] sm:$0xff] %vm838, %v739
  %847 = vst.msk [vmem:[%s5 + $0x40] sm:$0xff] %vm838, %v744
  %848 = vst.msk [vmem:[%s5 + $0x48] sm:$0xff] %vm838, %v747
  %849 = vst.msk [vmem:[%s5 + $0x50] sm:$0xff] %vm838, %v752
  %850 = vst.msk [vmem:[%s5 + $0x58] sm:$0xff] %vm838, %v755
  %851 = vst.msk [vmem:[%s5 + $0x60] sm:$0xff] %vm838, %v760
  %852 = vst.msk [vmem:[%s5 + $0x68] sm:$0xff] %vm838, %v763
  %853 = vst.msk [vmem:[%s5 + $0x70] sm:$0xff] %vm838, %v768
  %854 = vst.msk [vmem:[%s5 + $0x78] sm:$0xff] %vm838, %v771
  %855 = vst.msk [vmem:[%s5 + $0x80] sm:$0xff] %vm838, %v776
  %856 = vst.msk [vmem:[%s5 + $0x88] sm:$0xff] %vm838, %v779
  %857 = vst.msk [vmem:[%s5 + $0x90] sm:$0xff] %vm838, %v784
  %858 = vst.msk [vmem:[%s5 + $0x98] sm:$0xff] %vm838, %v787
  %859 = vst.msk [vmem:[%s5 + $0xa0] sm:$0xff] %vm838, %v792
  %860 = vst.msk [vmem:[%s5 + $0xa8] sm:$0xff] %vm838, %v795
  %861 = vst.msk [vmem:[%s5 + $0xb0] sm:$0xff] %vm838, %v800
  %862 = vst.msk [vmem:[%s5 + $0xb8] sm:$0xff] %vm838, %v803
  %863 = vst.msk [vmem:[%s5 + $0xc0] sm:$0xff] %vm838, %v808
  %864 = vst.msk [vmem:[%s5 + $0xc8] sm:$0xff] %vm838, %v811
  %865 = vst.msk [vmem:[%s5 + $0xd0] sm:$0xff] %vm838, %v816
  %866 = vst.msk [vmem:[%s5 + $0xd8] sm:$0xff] %vm838, %v819
  %867 = vst.msk [vmem:[%s5 + $0xe0] sm:$0xff] %vm838, %v824
  %868 = vst.msk [vmem:[%s5 + $0xe8] sm:$0xff] %vm838, %v827
  %869 = vst.msk [vmem:[%s5 + $0xf0] sm:$0xff] %vm838, %v832
  %870 = vst.msk [vmem:[%s5 + $0xf8] sm:$0xff] %vm838, %v835
  // Predicated region
  $region22: #{tpu_custom_call.1} parent=0 // pred_check
    _
  $region23: #{tpu_custom_call.1} parent=0 // pred_check_branch
    %872 = sbr.rel (0) target = $region25
  $region24: #{tpu_custom_call.1} parent=0 // pred_region
    _
  $region25: #{tpu_custom_call.1} parent=0 // pred_fallthru
    _
  // Predicated region
  $region26: #{tpu_custom_call.1} parent=0 // pred_check
    _
  $region27: #{tpu_custom_call.1} parent=0 // pred_check_branch
    %874 = sbr.rel (0) target = $region29
  $region28: #{tpu_custom_call.1} parent=0 // pred_region
    _
  $region29: #{tpu_custom_call.1} parent=0 // pred_fallthru
    _

</llo_original>
